<compile_context>
chip_gen: v6e
topology: v6e:2x2x1
jax: 0.10.0
libtpu: 0.0.40
codegen_flags: <defaults>
</compile_context>

<pallas_src>
import jax
import jax.numpy as jnp
from jax.experimental import pallas as pl
from jax.experimental.pallas import tpu as pltpu


# ----------------------------------------------------------------------------
# Pallas kernel: identity copy (the pass-through body of the base Decoder).
# ----------------------------------------------------------------------------
def _identity_kernel(x_ref, o_ref):
    o_ref[...] = x_ref[...]


def _vmem_capacity_bytes() -> int:
    """Per-generation VMEM capacity; conservative fallback (v7x per-TC)."""
    try:
        return int(pltpu.get_tpu_info().vmem_capacity_bytes)
    except Exception:
        return 64 * 1024 * 1024


def _choose_tiles(R: int, H: int, dtype) -> tuple[int, int, int]:
    """Pick the largest (tile_rows, tile_h) that fits the VMEM budget.

    Keeps tile_rows a multiple of the dtype's sublane packing (8 for f32,
    16 for bf16, 32 for int8/fp8) and tile_h a multiple of 128 (or full H),
    so blocks satisfy the (8,128) rule and stores stay full-width vst.
    Returns (tile_rows, tile_h, vmem_limit_bytes).
    """
    itemsize = jnp.dtype(dtype).itemsize
    sublane = {4: 8, 2: 16, 1: 32}.get(itemsize, 8)

    cap = _vmem_capacity_bytes()
    # in + out tiles, each double-buffered => 4 live tiles; keep ~60% of VMEM
    # for them and leave the rest as headroom for the compiler.
    per_tile_budget = (cap * 6 // 10) // 4

    # Hidden (lane) tile: full H when it fits next to the minimum row count,
    # otherwise the largest multiple of 128 that does.
    if H * sublane * itemsize <= per_tile_budget:
        tile_h = H
    else:
        tile_h = max(128, (per_tile_budget // (sublane * itemsize)) // 128 * 128)
        if H >= 128:
            tile_h = min(tile_h, (H // 128) * 128)
        else:
            tile_h = H

    # Row (sublane) tile: biggest multiple of `sublane` rows fitting the budget;
    # use the full row extent when it fits (full-dim blocks are always legal).
    max_rows = max(sublane, per_tile_budget // max(1, tile_h * itemsize))
    if max_rows >= R:
        tile_rows = R
    else:
        tile_rows = max(sublane, (max_rows // sublane) * sublane)

    tile_bytes = tile_rows * tile_h * itemsize
    vmem_limit = min(int(cap * 0.9), max(32 << 20, 4 * tile_bytes + (8 << 20)))
    return tile_rows, tile_h, vmem_limit


def pallas_identity(x: jax.Array) -> jax.Array:
    """Identity pass-through as a VMEM-budgeted, 2-D-tiled Pallas TPU kernel.

    x: (R, H).  Returns a bitwise copy of x; the output aliases the input
    buffer (input_output_aliases) so the identity avoids a second HBM write
    whenever XLA can honor the alias.
    """
    R, H = x.shape
    tile_rows, tile_h, vmem_limit = _choose_tiles(R, H, x.dtype)
    grid = (pl.cdiv(R, tile_rows), pl.cdiv(H, tile_h))

    return pl.pallas_call(
        _identity_kernel,
        out_shape=jax.ShapeDtypeStruct((R, H), x.dtype),
        grid=grid,
        in_specs=[pl.BlockSpec((tile_rows, tile_h), lambda i, j: (i, j))],
        out_specs=pl.BlockSpec((tile_rows, tile_h), lambda i, j: (i, j)),
        input_output_aliases={0: 0},
        compiler_params=pltpu.CompilerParams(
            dimension_semantics=("parallel", "parallel"),
            vmem_limit_bytes=vmem_limit,
        ),
    )(x)


# ----------------------------------------------------------------------------
# The Decoder interface, mirrored 1:1 from the PyTorch module.
# ----------------------------------------------------------------------------
class Decoder:
    """编码器-解码器架构的基本解码器接口 (JAX/Pallas mirror)."""

    def __init__(self, **kwargs):
        super().__init__()

    def init_state(self, enc_outputs, *args):
        # Same semantics as the PyTorch base class.
        raise NotImplementedError

    def forward(self, X, state):
        # Same semantics as the PyTorch base class.
        # TODO(synk): the base-class forward raises NotImplementedError in the
        # reference; concrete subclasses place their compute in Pallas kernels
        # such as `pallas_identity` above.
        raise NotImplementedError


if __name__ == "__main__":
    key = jax.random.PRNGKey(0)
    # Small shapes consistent with a seq2seq decoder input: (batch, seq, hidden)
    batch, seq, hidden = 2, 8, 128
    X = jax.random.normal(key, (batch, seq, hidden), dtype=jnp.float32)

    # Confirm the abstract interface matches PyTorch semantics.
    dec = Decoder()
    interface_ok = True
    try:
        dec.forward(X, None)
        interface_ok = False
    except NotImplementedError:
        pass
    try:
        dec.init_state(None)
        interface_ok = False
    except NotImplementedError:
        pass

    # Run the Pallas pass-through kernel (the only concrete compute available).
    x2d = X.reshape(batch * seq, hidden)            # (16, 128) -> single block
    y2d = pallas_identity(x2d)
    y = y2d.reshape(batch, seq, hidden)
    jax.block_until_ready(y)

    assert interface_ok
    assert jnp.array_equal(y, X)
    print("KERNEL_OK")
</pallas_src>

<mosaic_0001>
module attributes {stable_mosaic.version = 11 : i64} {
  func.func @_identity_kernel(%arg0: i32, %arg1: i32, %arg2: memref<16x128xf32, #tpu.memory_space<vmem>>, %arg3: memref<16x128xf32, #tpu.memory_space<vmem>>) attributes {dimension_semantics = [#tpu.dimension_semantics<parallel>, #tpu.dimension_semantics<parallel>], iteration_bounds = array<i64: 1, 1>, scalar_prefetch = 0 : i64, scratch_operands = 0 : i64, tpu.core_type = #tpu.core_type<tc>, window_params = [{transform_indices = @transform_0, window_bounds = array<i64: 16, 128>}, {transform_indices = @transform_1, window_bounds = array<i64: 16, 128>}]} {
    %c0 = arith.constant 0 : index
    %c0_0 = arith.constant 0 : index
    %0 = vector.load %arg2[%c0, %c0_0] : memref<16x128xf32, #tpu.memory_space<vmem>>, vector<16x128xf32>
    %c0_1 = arith.constant 0 : index
    %c0_2 = arith.constant 0 : index
    %1 = vector.load %arg3[%c0_1, %c0_2] : memref<16x128xf32, #tpu.memory_space<vmem>>, vector<16x128xf32>
    tpu.vector_store %arg3[%c0_1, %c0_2], %0 {strides = array<i32>} : memref<16x128xf32, #tpu.memory_space<vmem>>, vector<16x128xf32>,
    return
  }
  func.func @transform_0(%arg0: i32, %arg1: i32) -> (i32, i32) {
    %c0_i32 = arith.constant 0 : i32
    return %arg0, %arg1 : i32, i32
  }
  func.func @transform_1(%arg0: i32, %arg1: i32) -> (i32, i32) {
    %c0_i32 = arith.constant 0 : i32
    return %arg0, %arg1 : i32, i32
  }
}

</mosaic_0001>

<llo_original>
// kernel: tpu_custom_call.1
$region0: #{tpu_custom_call.1}
  #allocation0 [shape = 'u32[]', space=smem, size = 0x4, offset = 0x4, fixed_abs, tag = 'smem constant byte address 0x4 - core index']
  #allocation1 [shape = 'u32[144,128]{1,0:T(1,128)}', space=vmem, size = 0x12000, scoped, tag = 'internal scratch']
  %s0 = inlined_call_operand.hbm [shape: f32[16,128], index: 0, kind: input, shape index: {}, may-alias: {0,1}]
  %s1 = inlined_call_operand.hbm [shape: f32[16,128], index: 1, kind: output, shape index: {}, may-alias: {0,1}]
  %s2 = sld [smem:[#allocation0]]
  $region18: #{tpu_custom_call.1} parent=0
    _
  %s4 = ssub.s32 1, %s2
  %s5 = scalar_select 0, %s4, %s2
  $region1: #{tpu_custom_call.1} parent=0
    #allocation2 [shape = 'u8[8192]{0}', space=vmem, size = 0x2000, scoped, tag = 'input window, operand 0, single buffered']
    #allocation3 [shape = 's32[1]{0}', space=sflag, size = 0x4, scoped, tag = 'scoped memory for tpu_custom_call.1']
    #allocation4 [shape = 's32[1]{0}', space=sflag, size = 0x4, scoped, tag = 'scoped memory for tpu_custom_call.1']
    #allocation5 [shape = 'u8[8192]{0}', space=vmem, size = 0x2000, scoped, tag = 'output window, operand 0, single buffered']
    %6 = vsyncpa [#allocation3], 0
    %7 = vsyncpa [#allocation4], 0
    // Predicated region
    $region2: #{tpu_custom_call.1} parent=1 // pred_check
      _
    $region3: #{tpu_custom_call.1} parent=1 // pred_check_branch
      %9 = sbr.rel (0) target = $region5
    $region4: #{tpu_custom_call.1} parent=1 // pred_region
      %s11 = ssub.s32 256, 256
      %12 = vsyncadd [#allocation3], %s11
      %s13 = sshll.u32 [#allocation2], 4
      %s14 = int_to_ptr.vmem [resolvable:$true] %s13
      %19 = dma.hbm_to_vmem [thread:$0]  %s0, 256, %s14, [#allocation3], 128, 128, 8
    $region5: #{tpu_custom_call.1} parent=1 // pred_fallthru
      _
    // Predicated region
    $region6: #{tpu_custom_call.1} parent=1 // pred_check
      _
    $region7: #{tpu_custom_call.1} parent=1 // pred_check_branch
      %21 = sbr.rel (0) target = $region9
    $region8: #{tpu_custom_call.1} parent=1 // pred_region
      %22 = dma.done [#allocation3], 256
    $region9: #{tpu_custom_call.1} parent=1 // pred_fallthru
      _
    %v23 = vld [vmem:[#allocation2] sm:$0xff]
    %v24 = vld [vmem:[#allocation2 + $0x8] sm:$0xff]
    %25 = vst [vmem:[#allocation5] sm:$0xff] %v23
    %26 = vst [vmem:[#allocation5 + $0x8] sm:$0xff] %v24
    // Predicated region
    $region10: #{tpu_custom_call.1} parent=1 // pred_check
      _
    $region11: #{tpu_custom_call.1} parent=1 // pred_check_branch
      %28 = sbr.rel (0) target = $region13
    $region12: #{tpu_custom_call.1} parent=1 // pred_region
      %s30 = ssub.s32 256, 256
      %31 = vsyncadd [#allocation4], %s30
      %s32 = sshll.u32 [#allocation5], 4
      %s33 = int_to_ptr.vmem [resolvable:$true] %s32
      %38 = dma.vmem_to_hbm [thread:$0]  %s33, 256, %s1, [#allocation4], 128, 128, 8
    $region13: #{tpu_custom_call.1} parent=1 // pred_fallthru
      _
    // Predicated region
    $region14: #{tpu_custom_call.1} parent=1 // pred_check
      _
    $region15: #{tpu_custom_call.1} parent=1 // pred_check_branch
      %40 = sbr.rel (0) target = $region17
    $region16: #{tpu_custom_call.1} parent=1 // pred_region
      %41 = dma.done [#allocation4], 256
    $region17: #{tpu_custom_call.1} parent=1 // pred_fallthru
      _
    %42 = vsyncpa [#allocation3], 1
    %43 = vsyncpa [#allocation4], 1

</llo_original>
